<compile_context>
chip_gen: v5e
topology: v5e:2x2
jax: 0.10.0
libtpu: 0.0.40
codegen_flags: <defaults>
</compile_context>

<pallas_src>
import jax
import jax.numpy as jnp
from jax.experimental import pallas as pl
from jax.experimental.pallas import tpu as pltpu

LANE = 128


def _round_up(n, m):
    return ((n + m - 1) // m) * m


def qnetwork_kernel(x_ref,
                    w1_ref, b1_ref,
                    w2_ref, b2_ref,
                    w3_ref, b3_ref,
                    w4_ref, b4_ref,
                    o_ref):
    """One batch tile of the fused 4-layer MLP.

    Matmul operands are in the weight dtype (bf16 fast path or f32);
    accumulation, bias-add and ReLU are always f32.
    """
    w_dtype = w1_ref.dtype
    # dense1 + relu1
    h = jnp.dot(x_ref[...], w1_ref[...], preferred_element_type=jnp.float32)
    h = jnp.maximum(h + b1_ref[...], 0.0)
    # dense2 + relu2
    h = jnp.dot(h.astype(w_dtype), w2_ref[...], preferred_element_type=jnp.float32)
    h = jnp.maximum(h + b2_ref[...], 0.0)
    # dense3 + relu3
    h = jnp.dot(h.astype(w_dtype), w3_ref[...], preferred_element_type=jnp.float32)
    h = jnp.maximum(h + b3_ref[...], 0.0)
    # output head (no activation); w4/b4 are unpadded -> (TB, action_dim) directly
    q = jnp.dot(h.astype(w_dtype), w4_ref[...], preferred_element_type=jnp.float32)
    o_ref[...] = (q + b4_ref[...]).astype(o_ref.dtype)


def prepare_params(params, *, use_bf16=True):
    """One-time weight prep (hoisted out of the hot path).

    Hidden dims are zero-padded to 128 lanes (exact math: zero cols + zero
    bias + relu(0)=0 feed zero rows of the next weight).  Input and output
    dims are left unpadded so HBM-facing activation/result arrays stay small.
    Returns (flat_params, dims, padded_dims, weight_dtype).
    """
    w_dtype = jnp.bfloat16 if use_bf16 else jnp.float32
    dims = (params["w1"].shape[0],
            params["w1"].shape[1], params["w2"].shape[1],
            params["w3"].shape[1], params["w4"].shape[1])
    padded = (dims[0],
              _round_up(dims[1], LANE), _round_up(dims[2], LANE),
              _round_up(dims[3], LANE), dims[4])
    flat = []
    for i in range(1, 5):
        w = jnp.asarray(params[f"w{i}"], jnp.float32)
        b = jnp.asarray(params[f"b{i}"], jnp.float32).reshape(1, -1)
        wp = jnp.zeros((padded[i - 1], padded[i]), jnp.float32)
        wp = wp.at[:w.shape[0], :w.shape[1]].set(w).astype(w_dtype)
        bp = jnp.zeros((1, padded[i]), jnp.float32).at[:, :b.shape[1]].set(b)
        flat += [wp, bp]
    return tuple(flat), dims, padded, w_dtype


def qnetwork_forward(x, prepared, *, block_b=1024):
    """x: [B, state_dim].  prepared: output of prepare_params()."""
    flat_params, dims, padded, w_dtype = prepared
    B, state_dim = x.shape
    assert state_dim == dims[0]
    action_dim = dims[4]

    # Cast activations to the matmul operand dtype in the wrapper so the
    # activation DMA is already narrow (bf16 halves the bytes).
    x = jnp.asarray(x, w_dtype)

    # Batch tiling: TB rows per grid step (multiple of 8 sublanes), big enough
    # to amortize ~0.35us/step overhead, but >=2 blocks so v7x's second
    # TensorCore gets work when the batch allows.
    TB = max(8, min(block_b, _round_up(B, 8)))
    if _round_up(B, TB) == TB and B >= 16:
        TB = max(8, _round_up((B + 1) // 2, 8))
    Bp = _round_up(B, TB)
    if Bp != B:
        x = jnp.pad(x, ((0, Bp - B), (0, 0)))   # zero batch rows: exact, sliced off

    grid = (Bp // TB,)
    const_map = lambda i: (0, 0)      # weights/biases: one DMA, VMEM-resident
    in_specs = [pl.BlockSpec((TB, state_dim), lambda i: (i, 0))]
    for i in range(4):
        in_specs.append(pl.BlockSpec((padded[i], padded[i + 1]), const_map))
        in_specs.append(pl.BlockSpec((1, padded[i + 1]), const_map))
    out_specs = pl.BlockSpec((TB, action_dim), lambda i: (i, 0))

    # Cost estimate from the shapes actually executed (padded hidden dims,
    # narrow HBM-facing I/O).
    w_itemsize = jnp.dtype(w_dtype).itemsize
    flops = 2 * Bp * sum(padded[i] * padded[i + 1] for i in range(4))
    bytes_accessed = (Bp * state_dim * w_itemsize            # activation read
                      + Bp * action_dim * 4                  # result write
                      + sum(padded[i] * padded[i + 1] for i in range(4)) * w_itemsize
                      + sum(padded[1:]) * 4)                 # biases (f32)

    out = pl.pallas_call(
        qnetwork_kernel,
        out_shape=jax.ShapeDtypeStruct((Bp, action_dim), jnp.float32),
        grid=grid,
        in_specs=in_specs,
        out_specs=out_specs,
        compiler_params=pltpu.CompilerParams(
            dimension_semantics=("parallel",)),   # batch blocks independent
        cost_estimate=pl.CostEstimate(flops=flops, transcendentals=0,
                                      bytes_accessed=bytes_accessed),
    )(x, *flat_params)

    return out if Bp == B else out[:B]


def init_params(key, state_dim, action_dim, architecture):
    """Deterministic init matching torch.nn.Linear's U(-1/sqrt(fan_in), 1/sqrt(fan_in))."""
    dims = [state_dim, architecture[0], architecture[1], architecture[2], action_dim]
    params = {}
    for i, (fan_in, fan_out) in enumerate(zip(dims[:-1], dims[1:]), start=1):
        key, kw, kb = jax.random.split(key, 3)
        bound = 1.0 / jnp.sqrt(jnp.float32(fan_in))
        # stored as [in, out] so the kernel can do x @ W directly
        params[f"w{i}"] = jax.random.uniform(
            kw, (fan_in, fan_out), jnp.float32, minval=-bound, maxval=bound)
        params[f"b{i}"] = jax.random.uniform(
            kb, (fan_out,), jnp.float32, minval=-bound, maxval=bound)
    return params


def reference_forward(x, params):
    h = x
    for i in (1, 2, 3):
        h = jnp.maximum(h @ params[f"w{i}"] + params[f"b{i}"], 0.0)
    return h @ params["w4"] + params["b4"]


if __name__ == "__main__":
    key = jax.random.PRNGKey(0)
    batch = 50                  # deliberately not a multiple of the batch tile
    state_dim = 8
    architecture = (32, 32, 32)
    action_dim = 4

    key, kx = jax.random.split(key)
    x = jax.random.normal(kx, (batch, state_dim), jnp.float32)
    params = init_params(key, state_dim, action_dim, architecture)

    ref = reference_forward(x, params)

    # bf16-operand / f32-accumulate fast path (default on all generations).
    prep_bf16 = prepare_params(params, use_bf16=True)
    out_bf16 = jax.block_until_ready(qnetwork_forward(x, prep_bf16))
    assert out_bf16.shape == (batch, action_dim)
    assert jnp.allclose(out_bf16, ref, atol=5e-2, rtol=5e-2), "bf16 mismatch vs reference"

    # f32-operand path for a tight numerical check (also exercises grid > 1
    # with a small batch tile and batch padding).
    prep_f32 = prepare_params(params, use_bf16=False)
    out_f32 = jax.block_until_ready(qnetwork_forward(x, prep_f32, block_b=16))
    assert out_f32.shape == (batch, action_dim)
    assert jnp.allclose(out_f32, ref, atol=1e-5, rtol=1e-5), "f32 mismatch vs reference"

    print("KERNEL_OK")
</pallas_src>

<mosaic_0001>
module attributes {stable_mosaic.version = 11 : i64} {
  func.func @qnetwork_kernel(%arg0: i32, %arg1: memref<32x8xbf16, #tpu.memory_space<vmem>>, %arg2: memref<8x128xbf16, #tpu.memory_space<vmem>>, %arg3: memref<1x128xf32, #tpu.memory_space<vmem>>, %arg4: memref<128x128xbf16, #tpu.memory_space<vmem>>, %arg5: memref<1x128xf32, #tpu.memory_space<vmem>>, %arg6: memref<128x128xbf16, #tpu.memory_space<vmem>>, %arg7: memref<1x128xf32, #tpu.memory_space<vmem>>, %arg8: memref<128x4xbf16, #tpu.memory_space<vmem>>, %arg9: memref<1x4xf32, #tpu.memory_space<vmem>>, %arg10: memref<32x4xf32, #tpu.memory_space<vmem>>) attributes {dimension_semantics = [#tpu.dimension_semantics<parallel>], iteration_bounds = array<i64: 2>, scalar_prefetch = 0 : i64, scratch_operands = 0 : i64, tpu.core_type = #tpu.core_type<tc>, window_params = [{transform_indices = @transform_0, window_bounds = array<i64: 32, 8>}, {pipeline_mode = #tpu.pipeline_mode<synchronous>, transform_indices = @transform_1, window_bounds = array<i64: 8, 128>}, {pipeline_mode = #tpu.pipeline_mode<synchronous>, transform_indices = @transform_2, window_bounds = array<i64: 1, 128>}, {pipeline_mode = #tpu.pipeline_mode<synchronous>, transform_indices = @transform_3, window_bounds = array<i64: 128, 128>}, {pipeline_mode = #tpu.pipeline_mode<synchronous>, transform_indices = @transform_4, window_bounds = array<i64: 1, 128>}, {pipeline_mode = #tpu.pipeline_mode<synchronous>, transform_indices = @transform_5, window_bounds = array<i64: 128, 128>}, {pipeline_mode = #tpu.pipeline_mode<synchronous>, transform_indices = @transform_6, window_bounds = array<i64: 1, 128>}, {pipeline_mode = #tpu.pipeline_mode<synchronous>, transform_indices = @transform_7, window_bounds = array<i64: 128, 4>}, {pipeline_mode = #tpu.pipeline_mode<synchronous>, transform_indices = @transform_8, window_bounds = array<i64: 1, 4>}, {transform_indices = @transform_9, window_bounds = array<i64: 32, 4>}]} {
    %c0 = arith.constant 0 : index
    %c0_0 = arith.constant 0 : index
    %0 = vector.load %arg1[%c0, %c0_0] : memref<32x8xbf16, #tpu.memory_space<vmem>>, vector<32x8xbf16>
    %c0_1 = arith.constant 0 : index
    %c0_2 = arith.constant 0 : index
    %1 = vector.load %arg2[%c0_1, %c0_2] : memref<8x128xbf16, #tpu.memory_space<vmem>>, vector<8x128xbf16>
    %cst = arith.constant dense<0.000000e+00> : vector<32x128xf32>
    %2 = tpu.matmul %0, %1, %cst {dimension_numbers = #tpu.dot_dimension_numbers<[1], [0], [0], [1], [0, 0, 1, 1], [], []>} : vector<32x8xbf16>, vector<8x128xbf16>, vector<32x128xf32> -> vector<32x128xf32>
    %c0_3 = arith.constant 0 : index
    %c0_4 = arith.constant 0 : index
    %3 = vector.load %arg3[%c0_3, %c0_4] : memref<1x128xf32, #tpu.memory_space<vmem>>, vector<1x128xf32>
    %4 = vector.broadcast %3 : vector<1x128xf32> to vector<32x128xf32>
    %5 = arith.addf %2, %4 : vector<32x128xf32>
    %cst_5 = arith.constant 0.000000e+00 : f32
    %6 = vector.broadcast %cst_5 : f32 to vector<32x128xf32>
    %7 = arith.maximumf %5, %6 : vector<32x128xf32>
    %8 = arith.truncf %7 : vector<32x128xf32> to vector<32x128xbf16>
    %c0_6 = arith.constant 0 : index
    %c0_7 = arith.constant 0 : index
    %9 = vector.load %arg4[%c0_6, %c0_7] : memref<128x128xbf16, #tpu.memory_space<vmem>>, vector<128x128xbf16>
    %cst_8 = arith.constant dense<0.000000e+00> : vector<32x128xf32>
    %10 = tpu.matmul %8, %9, %cst_8 {dimension_numbers = #tpu.dot_dimension_numbers<[1], [0], [0], [1], [0, 0, 1, 1], [], []>} : vector<32x128xbf16>, vector<128x128xbf16>, vector<32x128xf32> -> vector<32x128xf32>
    %c0_9 = arith.constant 0 : index
    %c0_10 = arith.constant 0 : index
    %11 = vector.load %arg5[%c0_9, %c0_10] : memref<1x128xf32, #tpu.memory_space<vmem>>, vector<1x128xf32>
    %12 = vector.broadcast %11 : vector<1x128xf32> to vector<32x128xf32>
    %13 = arith.addf %10, %12 : vector<32x128xf32>
    %cst_11 = arith.constant 0.000000e+00 : f32
    %14 = vector.broadcast %cst_11 : f32 to vector<32x128xf32>
    %15 = arith.maximumf %13, %14 : vector<32x128xf32>
    %16 = arith.truncf %15 : vector<32x128xf32> to vector<32x128xbf16>
    %c0_12 = arith.constant 0 : index
    %c0_13 = arith.constant 0 : index
    %17 = vector.load %arg6[%c0_12, %c0_13] : memref<128x128xbf16, #tpu.memory_space<vmem>>, vector<128x128xbf16>
    %cst_14 = arith.constant dense<0.000000e+00> : vector<32x128xf32>
    %18 = tpu.matmul %16, %17, %cst_14 {dimension_numbers = #tpu.dot_dimension_numbers<[1], [0], [0], [1], [0, 0, 1, 1], [], []>} : vector<32x128xbf16>, vector<128x128xbf16>, vector<32x128xf32> -> vector<32x128xf32>
    %c0_15 = arith.constant 0 : index
    %c0_16 = arith.constant 0 : index
    %19 = vector.load %arg7[%c0_15, %c0_16] : memref<1x128xf32, #tpu.memory_space<vmem>>, vector<1x128xf32>
    %20 = vector.broadcast %19 : vector<1x128xf32> to vector<32x128xf32>
    %21 = arith.addf %18, %20 : vector<32x128xf32>
    %cst_17 = arith.constant 0.000000e+00 : f32
    %22 = vector.broadcast %cst_17 : f32 to vector<32x128xf32>
    %23 = arith.maximumf %21, %22 : vector<32x128xf32>
    %24 = arith.truncf %23 : vector<32x128xf32> to vector<32x128xbf16>
    %c0_18 = arith.constant 0 : index
    %c0_19 = arith.constant 0 : index
    %25 = vector.load %arg8[%c0_18, %c0_19] : memref<128x4xbf16, #tpu.memory_space<vmem>>, vector<128x4xbf16>
    %cst_20 = arith.constant dense<0.000000e+00> : vector<32x4xf32>
    %26 = tpu.matmul %24, %25, %cst_20 {dimension_numbers = #tpu.dot_dimension_numbers<[1], [0], [0], [1], [0, 0, 1, 1], [], []>} : vector<32x128xbf16>, vector<128x4xbf16>, vector<32x4xf32> -> vector<32x4xf32>
    %c0_21 = arith.constant 0 : index
    %c0_22 = arith.constant 0 : index
    %27 = vector.load %arg9[%c0_21, %c0_22] : memref<1x4xf32, #tpu.memory_space<vmem>>, vector<1x4xf32>
    %28 = vector.broadcast %27 : vector<1x4xf32> to vector<32x4xf32>
    %29 = arith.addf %26, %28 : vector<32x4xf32>
    %c0_23 = arith.constant 0 : index
    %c0_24 = arith.constant 0 : index
    %30 = vector.load %arg10[%c0_23, %c0_24] : memref<32x4xf32, #tpu.memory_space<vmem>>, vector<32x4xf32>
    tpu.vector_store %arg10[%c0_23, %c0_24], %29 {strides = array<i32>} : memref<32x4xf32, #tpu.memory_space<vmem>>, vector<32x4xf32>,
    return
  }
  func.func @transform_0(%arg0: i32) -> (i32, i32) {
    %c0_i32 = arith.constant 0 : i32
    %c0_i32_0 = arith.constant 0 : i32
    return %arg0, %c0_i32 : i32, i32
  }
  func.func @transform_1(%arg0: i32) -> (i32, i32) {
    %c0_i32 = arith.constant 0 : i32
    %c0_i32_0 = arith.constant 0 : i32
    %c0_i32_1 = arith.constant 0 : i32
    return %c0_i32, %c0_i32_0 : i32, i32
  }
  func.func @transform_2(%arg0: i32) -> (i32, i32) {
    %c0_i32 = arith.constant 0 : i32
    %c0_i32_0 = arith.constant 0 : i32
    %c0_i32_1 = arith.constant 0 : i32
    return %c0_i32, %c0_i32_0 : i32, i32
  }
  func.func @transform_3(%arg0: i32) -> (i32, i32) {
    %c0_i32 = arith.constant 0 : i32
    %c0_i32_0 = arith.constant 0 : i32
    %c0_i32_1 = arith.constant 0 : i32
    return %c0_i32, %c0_i32_0 : i32, i32
  }
  func.func @transform_4(%arg0: i32) -> (i32, i32) {
    %c0_i32 = arith.constant 0 : i32
    %c0_i32_0 = arith.constant 0 : i32
    %c0_i32_1 = arith.constant 0 : i32
    return %c0_i32, %c0_i32_0 : i32, i32
  }
  func.func @transform_5(%arg0: i32) -> (i32, i32) {
    %c0_i32 = arith.constant 0 : i32
    %c0_i32_0 = arith.constant 0 : i32
    %c0_i32_1 = arith.constant 0 : i32
    return %c0_i32, %c0_i32_0 : i32, i32
  }
  func.func @transform_6(%arg0: i32) -> (i32, i32) {
    %c0_i32 = arith.constant 0 : i32
    %c0_i32_0 = arith.constant 0 : i32
    %c0_i32_1 = arith.constant 0 : i32
    return %c0_i32, %c0_i32_0 : i32, i32
  }
  func.func @transform_7(%arg0: i32) -> (i32, i32) {
    %c0_i32 = arith.constant 0 : i32
    %c0_i32_0 = arith.constant 0 : i32
    %c0_i32_1 = arith.constant 0 : i32
    return %c0_i32, %c0_i32_0 : i32, i32
  }
  func.func @transform_8(%arg0: i32) -> (i32, i32) {
    %c0_i32 = arith.constant 0 : i32
    %c0_i32_0 = arith.constant 0 : i32
    %c0_i32_1 = arith.constant 0 : i32
    return %c0_i32, %c0_i32_0 : i32, i32
  }
  func.func @transform_9(%arg0: i32) -> (i32, i32) {
    %c0_i32 = arith.constant 0 : i32
    %c0_i32_0 = arith.constant 0 : i32
    return %arg0, %c0_i32 : i32, i32
  }
}

</mosaic_0001>

<llo_original>
// kernel: tpu_custom_call.1
$region0: #{tpu_custom_call.1}
  #allocation0 [shape = 'u32[]', space=smem, size = 0x4, offset = 0x4, fixed_abs, tag = 'smem constant byte address 0x4 - core index']
  #allocation1 [shape = 'u32[72,128]{1,0:T(1,128)}', space=vmem, size = 0x9000, scoped, tag = 'internal scratch']
  %s0 = inlined_call_operand.vmem [shape: bf16[64,8], index: 0, kind: input, shape index: {}]
  %s1 = inlined_call_operand.vmem [shape: bf16[8,128], index: 1, kind: input, shape index: {}]
  %s2 = inlined_call_operand.vmem [shape: f32[1,128], index: 2, kind: input, shape index: {}]
  %s3 = inlined_call_operand.vmem [shape: bf16[128,128], index: 3, kind: input, shape index: {}]
  %s4 = inlined_call_operand.vmem [shape: f32[1,128], index: 4, kind: input, shape index: {}]
  %s5 = inlined_call_operand.hbm [shape: bf16[128,128], index: 5, kind: input, shape index: {}]
  %s6 = inlined_call_operand.vmem [shape: f32[1,128], index: 6, kind: input, shape index: {}]
  %s7 = inlined_call_operand.vmem [shape: bf16[128,4], index: 7, kind: input, shape index: {}]
  %s8 = inlined_call_operand.vmem [shape: f32[1,4], index: 8, kind: input, shape index: {}]
  %s9 = inlined_call_operand.vmem [shape: f32[64,4], index: 9, kind: output, shape index: {}]
  %s10 = sld [smem:[#allocation0]]
  $region73: #{tpu_custom_call.1} parent=0
    _
  %s12 = ssub.s32 1, %s10
  %s13 = scalar_select 0, %s12, %s10
  $region1: #{tpu_custom_call.1} parent=0
    #allocation2 [shape = 'u8[32768]{0}', space=vmem, size = 0x8000, scoped, tag = 'input window, operand 5, single buffered']
    #allocation3 [shape = 's32[2]{0}', space=sflag, size = 0x8, scoped, tag = 'scoped memory for tpu_custom_call.1']
    %14 = vsyncpa [#allocation3], 0
    loop: start=0, step=1, limit=4
    $region2: #{tpu_custom_call.1} parent=1 // loop_pre_header
      _
    $region3: #{tpu_custom_call.1} parent=1 // loop_header
      %s16 = sphi 0, %s20
      %p17 = scmp.ge.s32.totalorder %s16, 4
      %s26 = sphi 0, %s28
      %s29 = sphi 0, %s26
      %s30 = sphi 0, %s29
      %s46 = sphi 0, %s30
      %s50 = sphi 0, %s50
      %s52 = sphi 0, %s50
      %s53 = sphi 0, %s52
      %s67 = sphi 0, %s53
      %s71 = sphi 0, %s71
      %s73 = sphi 0, %s71
      %s74 = sphi 0, %s73
      %s88 = sphi 0, %s74
      %s92 = sphi 0, %s92
      %s94 = sphi 0, %s92
      %s95 = sphi 0, %s94
      %s109 = sphi 0, %s95
      %s113 = sphi 0, %s113
      %s115 = sphi 0, %s113
      %s116 = sphi 0, %s115
      %s130 = sphi 0, %s116
      %s134 = sphi 0, %s134
      %s136 = sphi 0, %s134
      %s137 = sphi 0, %s136
      %s151 = sphi 0, %s137
      %s155 = sphi 0, %s155
      %s157 = sphi 0, %s155
      %s158 = sphi 0, %s157
      %s172 = sphi 0, %s158
      %s176 = sphi 0, %s176
      %s178 = sphi 0, %s176
      %s179 = sphi 0, %s178
      %s193 = sphi 0, %s179
      %s197 = sphi 0, %s197
      %s199 = sphi 0, %s197
      %s200 = sphi 0, %s199
      %s214 = sphi 0, %s200
      %s220 = sphi 0, %s222
      %s223 = sphi 0, %s220
      %s224 = sphi 0, %s223
      %s240 = sphi 0, %s224
    $region4: #{tpu_custom_call.1} parent=1 // loop_header_branch
      %19 = sbr.rel (%p17) target = $region8
    $region5: #{tpu_custom_call.1} parent=1 // loop_body
      %s21 = ssub.s32 %s16, 1
      %s22 = ssub.s32 %s16, 2
      %s23 = sadd.s32 %s16, 1
      %s24 = ssub.s32 %s16, %s23
      %p25 = scmp.eq.s32.totalorder %s24, 0
      %s27 = sadd.s32 %s26, 1
      %s28 = scalar_select %p25, %s26, %s27
      %p31 = pneg %p25
      %p32 = scmp.eq.s32.totalorder %s16, 1
      %p33 = por %p31, %p32
      %p34 = scmp.ne.s32.totalorder %s26, %s29
      %p35 = scmp.eq.s32.totalorder %s16, 0
      %p36 = por %p34, %p35
      %p37 = scmp.ne.s32.totalorder %s26, %s29
      %p38 = scmp.eq.s32.totalorder %s21, 1
      %p39 = por %p37, %p38
      %p40 = scmp.ne.s32.totalorder %s29, %s30
      %p41 = scmp.eq.s32.totalorder %s21, 0
      %p42 = por %p40, %p41
      %p43 = scmp.ne.s32.totalorder %s29, %s30
      %p44 = scmp.eq.s32.totalorder %s22, 1
      %p45 = por %p43, %p44
      %p47 = scmp.ne.s32.totalorder %s30, %s46
      %p48 = scmp.eq.s32.totalorder %s22, 0
      %p49 = por %p47, %p48
      %s51 = sadd.s32 %s50, 1
      %p54 = scmp.eq.s32.totalorder %s16, 1
      %p55 = scmp.ne.s32.totalorder %s50, %s52
      %p56 = scmp.eq.s32.totalorder %s16, 0
      %p57 = por %p55, %p56
      %p58 = scmp.ne.s32.totalorder %s50, %s52
      %p59 = scmp.eq.s32.totalorder %s21, 1
      %p60 = por %p58, %p59
      %p61 = scmp.ne.s32.totalorder %s52, %s53
      %p62 = scmp.eq.s32.totalorder %s21, 0
      %p63 = por %p61, %p62
      %p64 = scmp.ne.s32.totalorder %s52, %s53
      %p65 = scmp.eq.s32.totalorder %s22, 1
      %p66 = por %p64, %p65
      %p68 = scmp.ne.s32.totalorder %s53, %s67
      %p69 = scmp.eq.s32.totalorder %s22, 0
      %p70 = por %p68, %p69
      %s72 = sadd.s32 %s71, 1
      %p75 = scmp.eq.s32.totalorder %s16, 1
      %p76 = scmp.ne.s32.totalorder %s71, %s73
      %p77 = scmp.eq.s32.totalorder %s16, 0
      %p78 = por %p76, %p77
      %p79 = scmp.ne.s32.totalorder %s71, %s73
      %p80 = scmp.eq.s32.totalorder %s21, 1
      %p81 = por %p79, %p80
      %p82 = scmp.ne.s32.totalorder %s73, %s74
      %p83 = scmp.eq.s32.totalorder %s21, 0
      %p84 = por %p82, %p83
      %p85 = scmp.ne.s32.totalorder %s73, %s74
      %p86 = scmp.eq.s32.totalorder %s22, 1
      %p87 = por %p85, %p86
      %p89 = scmp.ne.s32.totalorder %s74, %s88
      %p90 = scmp.eq.s32.totalorder %s22, 0
      %p91 = por %p89, %p90
      %s93 = sadd.s32 %s92, 1
      %p96 = scmp.eq.s32.totalorder %s16, 1
      %p97 = scmp.ne.s32.totalorder %s92, %s94
      %p98 = scmp.eq.s32.totalorder %s16, 0
      %p99 = por %p97, %p98
      %p100 = scmp.ne.s32.totalorder %s92, %s94
      %p101 = scmp.eq.s32.totalorder %s21, 1
      %p102 = por %p100, %p101
      %p103 = scmp.ne.s32.totalorder %s94, %s95
      %p104 = scmp.eq.s32.totalorder %s21, 0
      %p105 = por %p103, %p104
      %p106 = scmp.ne.s32.totalorder %s94, %s95
      %p107 = scmp.eq.s32.totalorder %s22, 1
      %p108 = por %p106, %p107
      %p110 = scmp.ne.s32.totalorder %s95, %s109
      %p111 = scmp.eq.s32.totalorder %s22, 0
      %p112 = por %p110, %p111
      %s114 = sadd.s32 %s113, 1
      %p117 = scmp.eq.s32.totalorder %s16, 1
      %p118 = scmp.ne.s32.totalorder %s113, %s115
      %p119 = scmp.eq.s32.totalorder %s16, 0
      %p120 = por %p118, %p119
      %p121 = scmp.ne.s32.totalorder %s113, %s115
      %p122 = scmp.eq.s32.totalorder %s21, 1
      %p123 = por %p121, %p122
      %p124 = scmp.ne.s32.totalorder %s115, %s116
      %p125 = scmp.eq.s32.totalorder %s21, 0
      %p126 = por %p124, %p125
      %p127 = scmp.ne.s32.totalorder %s115, %s116
      %p128 = scmp.eq.s32.totalorder %s22, 1
      %p129 = por %p127, %p128
      %p131 = scmp.ne.s32.totalorder %s116, %s130
      %p132 = scmp.eq.s32.totalorder %s22, 0
      %p133 = por %p131, %p132
      %s135 = sadd.s32 %s134, 1
      %p138 = scmp.eq.s32.totalorder %s16, 1
      %p139 = scmp.ne.s32.totalorder %s134, %s136
      %p140 = scmp.eq.s32.totalorder %s16, 0
      %p141 = por %p139, %p140
      %p142 = scmp.ne.s32.totalorder %s134, %s136
      %p143 = scmp.eq.s32.totalorder %s21, 1
      %p144 = por %p142, %p143
      %p145 = scmp.ne.s32.totalorder %s136, %s137
      %p146 = scmp.eq.s32.totalorder %s21, 0
      %p147 = por %p145, %p146
      %p148 = scmp.ne.s32.totalorder %s136, %s137
      %p149 = scmp.eq.s32.totalorder %s22, 1
      %p150 = por %p148, %p149
      %p152 = scmp.ne.s32.totalorder %s137, %s151
      %p153 = scmp.eq.s32.totalorder %s22, 0
      %p154 = por %p152, %p153
      %s156 = sadd.s32 %s155, 1
      %p159 = scmp.eq.s32.totalorder %s16, 1
      %p160 = scmp.ne.s32.totalorder %s155, %s157
      %p161 = scmp.eq.s32.totalorder %s16, 0
      %p162 = por %p160, %p161
      %p163 = scmp.ne.s32.totalorder %s155, %s157
      %p164 = scmp.eq.s32.totalorder %s21, 1
      %p165 = por %p163, %p164
      %p166 = scmp.ne.s32.totalorder %s157, %s158
      %p167 = scmp.eq.s32.totalorder %s21, 0
      %p168 = por %p166, %p167
      %p169 = scmp.ne.s32.totalorder %s157, %s158
      %p170 = scmp.eq.s32.totalorder %s22, 1
      %p171 = por %p169, %p170
      %p173 = scmp.ne.s32.totalorder %s158, %s172
      %p174 = scmp.eq.s32.totalorder %s22, 0
      %p175 = por %p173, %p174
      %s177 = sadd.s32 %s176, 1
      %p180 = scmp.eq.s32.totalorder %s16, 1
      %p181 = scmp.ne.s32.totalorder %s176, %s178
      %p182 = scmp.eq.s32.totalorder %s16, 0
      %p183 = por %p181, %p182
      %p184 = scmp.ne.s32.totalorder %s176, %s178
      %p185 = scmp.eq.s32.totalorder %s21, 1
      %p186 = por %p184, %p185
      %p187 = scmp.ne.s32.totalorder %s178, %s179
      %p188 = scmp.eq.s32.totalorder %s21, 0
      %p189 = por %p187, %p188
      %p190 = scmp.ne.s32.totalorder %s178, %s179
      %p191 = scmp.eq.s32.totalorder %s22, 1
      %p192 = por %p190, %p191
      %p194 = scmp.ne.s32.totalorder %s179, %s193
      %p195 = scmp.eq.s32.totalorder %s22, 0
      %p196 = por %p194, %p195
      %s198 = sadd.s32 %s197, 1
      %p201 = scmp.eq.s32.totalorder %s16, 1
      %p202 = scmp.ne.s32.totalorder %s197, %s199
      %p203 = scmp.eq.s32.totalorder %s16, 0
      %p204 = por %p202, %p203
      %p205 = scmp.ne.s32.totalorder %s197, %s199
      %p206 = scmp.eq.s32.totalorder %s21, 1
      %p207 = por %p205, %p206
      %p208 = scmp.ne.s32.totalorder %s199, %s200
      %p209 = scmp.eq.s32.totalorder %s21, 0
      %p210 = por %p208, %p209
      %p211 = scmp.ne.s32.totalorder %s199, %s200
      %p212 = scmp.eq.s32.totalorder %s22, 1
      %p213 = por %p211, %p212
      %p215 = scmp.ne.s32.totalorder %s200, %s214
      %p216 = scmp.eq.s32.totalorder %s22, 0
      %p217 = por %p215, %p216
      %s218 = ssub.s32 %s16, %s23
      %p219 = scmp.eq.s32.totalorder %s218, 0
      %s221 = sadd.s32 %s220, 1
      %s222 = scalar_select %p219, %s220, %s221
      %p225 = pneg %p219
      %p226 = scmp.eq.s32.totalorder %s16, 1
      %p227 = por %p225, %p226
      %p228 = scmp.ne.s32.totalorder %s220, %s223
      %p229 = scmp.eq.s32.totalorder %s16, 0
      %p230 = por %p228, %p229
      %p231 = scmp.ne.s32.totalorder %s220, %s223
      %p232 = scmp.eq.s32.totalorder %s21, 1
      %p233 = por %p231, %p232
      %p234 = scmp.ne.s32.totalorder %s223, %s224
      %p235 = scmp.eq.s32.totalorder %s21, 0
      %p236 = por %p234, %p235
      %p237 = scmp.ne.s32.totalorder %s223, %s224
      %p238 = scmp.eq.s32.totalorder %s22, 1
      %p239 = por %p237, %p238
      %p241 = scmp.ne.s32.totalorder %s224, %s240
      %p242 = scmp.eq.s32.totalorder %s22, 0
      %p243 = por %p241, %p242
      %p244 = scmp.le.s32.totalorder 1, %s16
      %p245 = scmp.lt.s32.totalorder %s16, 3
      %p246 = pnand %p244, %p245
      %p247 = pneg %p246
      // Predicated region
      $region9: #{tpu_custom_call.1} parent=5 // pred_check
        _
      $region10: #{tpu_custom_call.1} parent=5 // pred_check_branch
        %249 = sbr.rel (%p246) target = $region12
      $region11: #{tpu_custom_call.1} parent=5 // pred_region
        %s250 = ssub.s32 %s16, 1
        // Predicated region
        $region13: #{tpu_custom_call.1} parent=11 // pred_check
          %p251 = pneg %p63
        $region14: #{tpu_custom_call.1} parent=11 // pred_check_branch
          %253 = sbr.rel (%p251) target = $region16
        $region15: #{tpu_custom_call.1} parent=11 // pred_region
          _
        $region16: #{tpu_custom_call.1} parent=11 // pred_fallthru
          _
        // Predicated region
        $region17: #{tpu_custom_call.1} parent=11 // pred_check
          %p254 = pneg %p84
        $region18: #{tpu_custom_call.1} parent=11 // pred_check_branch
          %256 = sbr.rel (%p254) target = $region20
        $region19: #{tpu_custom_call.1} parent=11 // pred_region
          _
        $region20: #{tpu_custom_call.1} parent=11 // pred_fallthru
          _
        // Predicated region
        $region21: #{tpu_custom_call.1} parent=11 // pred_check
          %p257 = pneg %p105
        $region22: #{tpu_custom_call.1} parent=11 // pred_check_branch
          %259 = sbr.rel (%p257) target = $region24
        $region23: #{tpu_custom_call.1} parent=11 // pred_region
          _
        $region24: #{tpu_custom_call.1} parent=11 // pred_fallthru
          _
        // Predicated region
        $region25: #{tpu_custom_call.1} parent=11 // pred_check
          %p260 = pneg %p126
        $region26: #{tpu_custom_call.1} parent=11 // pred_check_branch
          %262 = sbr.rel (%p260) target = $region28
        $region27: #{tpu_custom_call.1} parent=11 // pred_region
          _
        $region28: #{tpu_custom_call.1} parent=11 // pred_fallthru
          _
        // Predicated region
        $region29: #{tpu_custom_call.1} parent=11 // pred_check
          %p263 = pneg %p147
        $region30: #{tpu_custom_call.1} parent=11 // pred_check_branch
          %265 = sbr.rel (%p263) target = $region32
        $region31: #{tpu_custom_call.1} parent=11 // pred_region
          %267 = vsyncadd [#allocation3], 0
          %s268 = sshll.u32 %s5, 4
          %s269 = int_to_ptr.hbm [resolvable:$true] %s268
          %s270 = sshll.u32 [#allocation2], 4
          %s271 = int_to_ptr.vmem [resolvable:$true] %s270
          %276 = dma.hbm_to_vmem [thread:$0]  %s269, 1024, %s271, [#allocation3], 64, 64, 4
        $region32: #{tpu_custom_call.1} parent=11 // pred_fallthru
          _
        // Predicated region
        $region33: #{tpu_custom_call.1} parent=11 // pred_check
          %p277 = pneg %p168
        $region34: #{tpu_custom_call.1} parent=11 // pred_check_branch
          %279 = sbr.rel (%p277) target = $region36
        $region35: #{tpu_custom_call.1} parent=11 // pred_region
          _
        $region36: #{tpu_custom_call.1} parent=11 // pred_fallthru
          _
        // Predicated region
        $region37: #{tpu_custom_call.1} parent=11 // pred_check
          %p280 = pneg %p189
        $region38: #{tpu_custom_call.1} parent=11 // pred_check_branch
          %282 = sbr.rel (%p280) target = $region40
        $region39: #{tpu_custom_call.1} parent=11 // pred_region
          _
        $region40: #{tpu_custom_call.1} parent=11 // pred_fallthru
          _
        // Predicated region
        $region41: #{tpu_custom_call.1} parent=11 // pred_check
          %p283 = pneg %p210
        $region42: #{tpu_custom_call.1} parent=11 // pred_check_branch
          %285 = sbr.rel (%p283) target = $region44
        $region43: #{tpu_custom_call.1} parent=11 // pred_region
          _
        $region44: #{tpu_custom_call.1} parent=11 // pred_fallthru
          _
      $region12: #{tpu_custom_call.1} parent=5 // pred_fallthru
        _
      %p286 = scmp.lt.s32.totalorder %s16, 2
      // Predicated region
      $region45: #{tpu_custom_call.1} parent=5 // pred_check
        %p287 = pneg %p286
      $region46: #{tpu_custom_call.1} parent=5 // pred_check_branch
        %289 = sbr.rel (%p287) target = $region48
      $region47: #{tpu_custom_call.1} parent=5 // pred_region
        // Predicated region
        $region49: #{tpu_custom_call.1} parent=47 // pred_check
          %p290 = pneg %p36
        $region50: #{tpu_custom_call.1} parent=47 // pred_check_branch
          %292 = sbr.rel (%p290) target = $region52
        $region51: #{tpu_custom_call.1} parent=47 // pred_region
          %s293 = smul.u32 4, %s16
          %p294 = scmp.lt.s32.totalorder %s293, 7
          %s295 = scalar_select %p294, %s293, 7
          %s296 = smul.addr %s295, 4
          %s297 = scalar_lea.vmem %s0, %s296
          %s298 = smul.u32 4, %s16
        $region52: #{tpu_custom_call.1} parent=47 // pred_fallthru
          _
      $region48: #{tpu_custom_call.1} parent=5 // pred_fallthru
        _
      %p299 = scmp.le.s32.totalorder 1, %s16
      %p300 = scmp.lt.s32.totalorder %s16, 3
      %p301 = pnand %p299, %p300
      %p302 = pneg %p301
      // Predicated region
      $region53: #{tpu_custom_call.1} parent=5 // pred_check
        _
      $region54: #{tpu_custom_call.1} parent=5 // pred_check_branch
        %304 = sbr.rel (%p301) target = $region56
      $region55: #{tpu_custom_call.1} parent=5 // pred_region
        %s305 = ssub.s32 %s16, 1
        // Predicated region
        $region57: #{tpu_custom_call.1} parent=55 // pred_check
          %p306 = pneg %p147
        $region58: #{tpu_custom_call.1} parent=55 // pred_check_branch
          %308 = sbr.rel (%p306) target = $region60
        $region59: #{tpu_custom_call.1} parent=55 // pred_region
          %310 = dma.done [#allocation3], 1024
        $region60: #{tpu_custom_call.1} parent=55 // pred_fallthru
          _
        %s311 = smul.u32 4, %s21
        %p312 = scmp.lt.s32.totalorder %s311, 7
        %s313 = scalar_select %p312, %s311, 7
        %s314 = smul.addr %s313, 4
        %s315 = scalar_lea.vmem %s0, %s314
        %p316 = pneg %p42
        %p317 = pneg %p39
        %p318 = pneg %p63
        %p319 = pneg %p60
        %p320 = pneg %p84
        %p321 = pneg %p81
        %p322 = pneg %p105
        %p323 = pneg %p102
        %p324 = pneg %p126
        %p325 = pneg %p123
        %p326 = pneg %p147
        %p327 = pneg %p144
        %p328 = pneg %p168
        %p329 = pneg %p165
        %p330 = pneg %p189
        %p331 = pneg %p186
        %p332 = pneg %p210
        %p333 = pneg %p207
        %p334 = pneg %p236
        %p335 = pneg %p233
        %s336 = smul.u32 4, %s21
        %p337 = scmp.lt.s32.totalorder %s336, 7
        %s338 = scalar_select %p337, %s336, 7
        %s339 = smul.addr %s338, 8
        %s340 = scalar_lea.vmem %s9, %s339
        %s341 = smul.u32 4, %s21
        %p342 = scmp.lt.s32.totalorder %s341, 7
        %s343 = scalar_select %p342, %s341, 7
        %s344 = smul.addr %s343, 4
        %s345 = scalar_lea.vmem %s0, %s344
        %s346 = smul.u32 4, %s21
        %s347 = smul.u32 4, %s21
        %p348 = scmp.lt.s32.totalorder %s347, 7
        %s349 = scalar_select %p348, %s347, 7
        %s350 = smul.addr %s349, 8
        %s351 = scalar_lea.vmem %s9, %s350
        %s352 = smul.u32 4, %s21
        %v354 = vld [vmem:[%s345] sm:$0xf]
        %v355 = vld [vmem:[%s345 + $0x4] sm:$0xf]
        %v356 = vld [vmem:[%s345 + $0x8] sm:$0xf]
        %v357 = vld [vmem:[%s345 + $0xc] sm:$0xf]
        %v358 = vld [vmem:[%s1] sm:$0xf]
        %v359 = vld [vmem:[%s2] sm:$0x1]
        %v361 = vperm.slane %v359, 0
        %v367 = vunpack.c.l.b16 %v354
        %v368 = vunpack.c.l.b16 %v355
        %v369 = vunpack.c.l.b16 %v356
        %v370 = vunpack.c.l.b16 %v357
        %v371 = vpack.c.b16 %v368, %v367
        %v372 = vpack.c.b16 %v370, %v369
        %vm373 = vcmask 64512
        %v375 = vsel %vm373, %v371, 0
        %v378 = vsel %vm373, %v372, 0
        %vm380 = vcmask 1043456
        %v382 = vsel %vm380, %v358, 0
        %384 = vmatpush.bf16.msra.mxu0 0
        %385 = vmatpush.bf16.msra.mxu0 0
        %386 = vmatpush.bf16.msra.mxu0 0
        %387 = vmatpush.bf16.msra.mxu0 0
        %388 = vmatpush.bf16.msra.mxu0 0
        %389 = vmatpush.bf16.msra.mxu0 0
        %390 = vmatpush.bf16.msra.mxu0 0
        %391 = vmatpush.bf16.msra.mxu0 %v382
        %392 = vmatmul.bf16.gmra.mxu0 %v375
        %v393 = vpop.f32.mrf.mxu0
        %v394 = vadd.f32 %v361, %v393
        %v395 = vpop.f32.mrf.mxu0
        %v396 = vadd.f32 %v361, %v395
        %397 = vmatmul.bf16.gmra.mxu0 %v378
        %v398 = vpop.f32.mrf.mxu0
        %v399 = vadd.f32 %v361, %v398
        %v400 = vpop.f32.mrf.mxu0
        %v401 = vadd.f32 %v361, %v400
        %402 = vdwg.mxu0
        %v403 = vmax.f32 %v394, 0.0
        %v404 = vmax.f32 %v396, 0.0
        %v405 = vmax.f32 %v399, 0.0
        %v406 = vmax.f32 %v401, 0.0
        %v407 = vpack.c.bf16 %v404, %v403
        %v408 = vpack.c.bf16 %v406, %v405
        %v409 = vld [vmem:[%s3] sm:$0xf]
        %v410 = vld [vmem:[%s3 + $0x4] sm:$0xf]
        %v411 = vld [vmem:[%s3 + $0x8] sm:$0xf]
        %v412 = vld [vmem:[%s3 + $0xc] sm:$0xf]
        %v413 = vld [vmem:[%s3 + $0x10] sm:$0xf]
        %v414 = vld [vmem:[%s3 + $0x14] sm:$0xf]
        %v415 = vld [vmem:[%s3 + $0x18] sm:$0xf]
        %v416 = vld [vmem:[%s3 + $0x1c] sm:$0xf]
        %v417 = vld [vmem:[%s3 + $0x20] sm:$0xf]
        %v418 = vld [vmem:[%s3 + $0x24] sm:$0xf]
        %v419 = vld [vmem:[%s3 + $0x28] sm:$0xf]
        %v420 = vld [vmem:[%s3 + $0x2c] sm:$0xf]
        %v421 = vld [vmem:[%s3 + $0x30] sm:$0xf]
        %v422 = vld [vmem:[%s3 + $0x34] sm:$0xf]
        %v423 = vld [vmem:[%s3 + $0x38] sm:$0xf]
        %v424 = vld [vmem:[%s3 + $0x3c] sm:$0xf]
        %v425 = vld [vmem:[%s4] sm:$0x1]
        %v427 = vperm.slane %v425, 0
        %v445 = vunpack.c.l.b16 %v409
        %v446 = vunpack.c.l.b16 %v410
        %v447 = vunpack.c.l.b16 %v411
        %v448 = vunpack.c.l.b16 %v412
        %v449 = vunpack.c.l.b16 %v413
        %v450 = vunpack.c.l.b16 %v414
        %v451 = vunpack.c.l.b16 %v415
        %v452 = vunpack.c.l.b16 %v416
        %v453 = vunpack.c.l.b16 %v417
        %v454 = vunpack.c.l.b16 %v418
        %v455 = vunpack.c.l.b16 %v419
        %v456 = vunpack.c.l.b16 %v420
        %v457 = vunpack.c.l.b16 %v421
        %v458 = vunpack.c.l.b16 %v422
        %v459 = vunpack.c.l.b16 %v423
        %v460 = vunpack.c.l.b16 %v424
        %v461 = vpack.c.b16 %v446, %v445
        %v462 = vpack.c.b16 %v448, %v447
        %v463 = vpack.c.b16 %v450, %v449
        %v464 = vpack.c.b16 %v452, %v451
        %v465 = vpack.c.b16 %v454, %v453
        %v466 = vpack.c.b16 %v456, %v455
        %v467 = vpack.c.b16 %v458, %v457
        %v468 = vpack.c.b16 %v460, %v459
        %477 = vmatpush.bf16.msra.mxu0 %v468
        %478 = vmatpush.bf16.msra.mxu0 %v467
        %479 = vmatpush.bf16.msra.mxu0 %v466
        %480 = vmatpush.bf16.msra.mxu0 %v465
        %481 = vmatpush.bf16.msra.mxu0 %v464
        %482 = vmatpush.bf16.msra.mxu0 %v463
        %483 = vmatpush.bf16.msra.mxu0 %v462
        %484 = vmatpush.bf16.msra.mxu0 %v461
        %485 = vmatmul.bf16.gmra.mxu0 %v407
        %v486 = vpop.f32.mrf.mxu0
        %v487 = vadd.f32 %v427, %v486
        %v488 = vpop.f32.mrf.mxu0
        %v489 = vadd.f32 %v427, %v488
        %490 = vmatmul.bf16.gmra.mxu0 %v408
        %v491 = vpop.f32.mrf.mxu0
        %v492 = vadd.f32 %v427, %v491
        %v493 = vpop.f32.mrf.mxu0
        %v494 = vadd.f32 %v427, %v493
        %495 = vdwg.mxu0
        %v496 = vmax.f32 %v487, 0.0
        %v497 = vmax.f32 %v489, 0.0
        %v498 = vmax.f32 %v492, 0.0
        %v499 = vmax.f32 %v494, 0.0
        %v500 = vpack.c.bf16 %v497, %v496
        %v501 = vpack.c.bf16 %v499, %v498
        %v502 = vld [vmem:[#allocation2] sm:$0xf]
        %v503 = vld [vmem:[#allocation2 + $0x4] sm:$0xf]
        %v504 = vld [vmem:[#allocation2 + $0x8] sm:$0xf]
        %v505 = vld [vmem:[#allocation2 + $0xc] sm:$0xf]
        %v506 = vld [vmem:[#allocation2 + $0x10] sm:$0xf]
        %v507 = vld [vmem:[#allocation2 + $0x14] sm:$0xf]
        %v508 = vld [vmem:[#allocation2 + $0x18] sm:$0xf]
        %v509 = vld [vmem:[#allocation2 + $0x1c] sm:$0xf]
        %v510 = vld [vmem:[#allocation2 + $0x20] sm:$0xf]
        %v511 = vld [vmem:[#allocation2 + $0x24] sm:$0xf]
        %v512 = vld [vmem:[#allocation2 + $0x28] sm:$0xf]
        %v513 = vld [vmem:[#allocation2 + $0x2c] sm:$0xf]
        %v514 = vld [vmem:[#allocation2 + $0x30] sm:$0xf]
        %v515 = vld [vmem:[#allocation2 + $0x34] sm:$0xf]
        %v516 = vld [vmem:[#allocation2 + $0x38] sm:$0xf]
        %v517 = vld [vmem:[#allocation2 + $0x3c] sm:$0xf]
        %v518 = vld [vmem:[%s6] sm:$0x1]
        %v520 = vperm.slane %v518, 0
        %v538 = vunpack.c.l.b16 %v502
        %v539 = vunpack.c.l.b16 %v503
        %v540 = vunpack.c.l.b16 %v504
        %v541 = vunpack.c.l.b16 %v505
        %v542 = vunpack.c.l.b16 %v506
        %v543 = vunpack.c.l.b16 %v507
        %v544 = vunpack.c.l.b16 %v508
        %v545 = vunpack.c.l.b16 %v509
        %v546 = vunpack.c.l.b16 %v510
        %v547 = vunpack.c.l.b16 %v511
        %v548 = vunpack.c.l.b16 %v512
        %v549 = vunpack.c.l.b16 %v513
        %v550 = vunpack.c.l.b16 %v514
        %v551 = vunpack.c.l.b16 %v515
        %v552 = vunpack.c.l.b16 %v516
        %v553 = vunpack.c.l.b16 %v517
        %v554 = vpack.c.b16 %v539, %v538
        %v555 = vpack.c.b16 %v541, %v540
        %v556 = vpack.c.b16 %v543, %v542
        %v557 = vpack.c.b16 %v545, %v544
        %v558 = vpack.c.b16 %v547, %v546
        %v559 = vpack.c.b16 %v549, %v548
        %v560 = vpack.c.b16 %v551, %v550
        %v561 = vpack.c.b16 %v553, %v552
        %570 = vmatpush.bf16.msra.mxu0 %v561
        %571 = vmatpush.bf16.msra.mxu0 %v560
        %572 = vmatpush.bf16.msra.mxu0 %v559
        %573 = vmatpush.bf16.msra.mxu0 %v558
        %574 = vmatpush.bf16.msra.mxu0 %v557
        %575 = vmatpush.bf16.msra.mxu0 %v556
        %576 = vmatpush.bf16.msra.mxu0 %v555
        %577 = vmatpush.bf16.msra.mxu0 %v554
        %578 = vmatmul.bf16.gmra.mxu0 %v500
        %v579 = vpop.f32.mrf.mxu0
        %v580 = vadd.f32 %v520, %v579
        %v581 = vpop.f32.mrf.mxu0
        %v582 = vadd.f32 %v520, %v581
        %583 = vmatmul.bf16.gmra.mxu0 %v501
        %v584 = vpop.f32.mrf.mxu0
        %v585 = vadd.f32 %v520, %v584
        %v586 = vpop.f32.mrf.mxu0
        %v587 = vadd.f32 %v520, %v586
        %588 = vdwg.mxu0
        %v589 = vmax.f32 %v580, 0.0
        %v590 = vmax.f32 %v582, 0.0
        %v591 = vmax.f32 %v585, 0.0
        %v592 = vmax.f32 %v587, 0.0
        %v593 = vpack.c.bf16 %v590, %v589
        %v594 = vpack.c.bf16 %v592, %v591
        %v595 = vld [vmem:[%s7] sm:$0xf]
        %v596 = vld [vmem:[%s7 + $0x4] sm:$0xf]
        %v597 = vld [vmem:[%s7 + $0x8] sm:$0xf]
        %v598 = vld [vmem:[%s7 + $0xc] sm:$0xf]
        %v599 = vld [vmem:[%s7 + $0x10] sm:$0xf]
        %v600 = vld [vmem:[%s7 + $0x14] sm:$0xf]
        %v601 = vld [vmem:[%s7 + $0x18] sm:$0xf]
        %v602 = vld [vmem:[%s7 + $0x1c] sm:$0xf]
        %v603 = vld [vmem:[%s7 + $0x20] sm:$0xf]
        %v604 = vld [vmem:[%s7 + $0x24] sm:$0xf]
        %v605 = vld [vmem:[%s7 + $0x28] sm:$0xf]
        %v606 = vld [vmem:[%s7 + $0x2c] sm:$0xf]
        %v607 = vld [vmem:[%s7 + $0x30] sm:$0xf]
        %v608 = vld [vmem:[%s7 + $0x34] sm:$0xf]
        %v609 = vld [vmem:[%s7 + $0x38] sm:$0xf]
        %v610 = vld [vmem:[%s7 + $0x3c] sm:$0xf]
        %v611 = vld [vmem:[%s8] sm:$0x1]
        %v613 = vperm.slane %v611, 0
        %v631 = vunpack.c.l.b16 %v595
        %v632 = vunpack.c.l.b16 %v596
        %v633 = vunpack.c.l.b16 %v597
        %v634 = vunpack.c.l.b16 %v598
        %v635 = vunpack.c.l.b16 %v599
        %v636 = vunpack.c.l.b16 %v600
        %v637 = vunpack.c.l.b16 %v601
        %v638 = vunpack.c.l.b16 %v602
        %v639 = vunpack.c.l.b16 %v603
        %v640 = vunpack.c.l.b16 %v604
        %v641 = vunpack.c.l.b16 %v605
        %v642 = vunpack.c.l.b16 %v606
        %v643 = vunpack.c.l.b16 %v607
        %v644 = vunpack.c.l.b16 %v608
        %v645 = vunpack.c.l.b16 %v609
        %v646 = vunpack.c.l.b16 %v610
        %v647 = vpack.c.b16 %v632, %v631
        %v648 = vpack.c.b16 %v634, %v633
        %v649 = vpack.c.b16 %v636, %v635
        %v650 = vpack.c.b16 %v638, %v637
        %v651 = vpack.c.b16 %v640, %v639
        %v652 = vpack.c.b16 %v642, %v641
        %v653 = vpack.c.b16 %v644, %v643
        %v654 = vpack.c.b16 %v646, %v645
        %663 = vmatpush.bf16.msra.mxu0 %v654
        %664 = vmatpush.bf16.msra.mxu0 %v653
        %665 = vmatpush.bf16.msra.mxu0 %v652
        %666 = vmatpush.bf16.msra.mxu0 %v651
        %667 = vmatpush.bf16.msra.mxu0 %v650
        %668 = vmatpush.bf16.msra.mxu0 %v649
        %669 = vmatpush.bf16.msra.mxu0 %v648
        %670 = vmatpush.bf16.msra.mxu0 %v647
        %671 = vmatmul.bf16.gmra.mxu0 %v593
        %v672 = vpop.f32.mrf.mxu0
        %v673 = vadd.f32 %v613, %v672
        %v674 = vpop.f32.mrf.mxu0
        %v675 = vadd.f32 %v613, %v674
        %676 = vmatmul.bf16.gmra.mxu0 %v594
        %v677 = vpop.f32.mrf.mxu0
        %v678 = vadd.f32 %v613, %v677
        %v679 = vpop.f32.mrf.mxu0
        %v680 = vadd.f32 %v613, %v679
        %681 = vdwg.mxu0
        %vm682 = vcmask 31744
        %683 = vst.msk [vmem:[%s351] sm:$0xff] %vm682, %v673
        %684 = vst.msk [vmem:[%s351 + $0x8] sm:$0xff] %vm682, %v675
        %685 = vst.msk [vmem:[%s351 + $0x10] sm:$0xff] %vm682, %v678
        %686 = vst.msk [vmem:[%s351 + $0x18] sm:$0xff] %vm682, %v680
        %s687 = smul.u32 4, %s21
        %p688 = scmp.lt.s32.totalorder %s687, 7
        %s689 = scalar_select %p688, %s687, 7
        %s690 = smul.addr %s689, 8
        %s691 = scalar_lea.vmem %s9, %s690
        // Predicated region
        $region61: #{tpu_custom_call.1} parent=55 // pred_check
          %p692 = pneg %p233
        $region62: #{tpu_custom_call.1} parent=55 // pred_check_branch
          %694 = sbr.rel (%p692) target = $region64
        $region63: #{tpu_custom_call.1} parent=55 // pred_region
          %s695 = smul.u32 4, %s21
        $region64: #{tpu_custom_call.1} parent=55 // pred_fallthru
          _
      $region56: #{tpu_custom_call.1} parent=5 // pred_fallthru
        _
      %p696 = scmp.le.s32.totalorder 2, %s16
      // Predicated region
      $region65: #{tpu_custom_call.1} parent=5 // pred_check
        %p697 = pneg %p696
      $region66: #{tpu_custom_call.1} parent=5 // pred_check_branch
        %699 = sbr.rel (%p697) target = $region68
      $region67: #{tpu_custom_call.1} parent=5 // pred_region
        %s700 = ssub.s32 %s16, 2
        // Predicated region
        $region69: #{tpu_custom_call.1} parent=67 // pred_check
          %p701 = pneg %p239
        $region70: #{tpu_custom_call.1} parent=67 // pred_check_branch
          %703 = sbr.rel (%p701) target = $region72
        $region71: #{tpu_custom_call.1} parent=67 // pred_region
          %s704 = smul.u32 4, %s22
          %p705 = scmp.lt.s32.totalorder %s704, 7
          %s706 = scalar_select %p705, %s704, 7
          %s707 = smul.addr %s706, 8
          %s708 = scalar_lea.vmem %s9, %s707
        $region72: #{tpu_custom_call.1} parent=67 // pred_fallthru
          _
      $region68: #{tpu_custom_call.1} parent=5 // pred_fallthru
        _
    $region6: #{tpu_custom_call.1} parent=1 // loop_footer
      %s20 = sadd.s32 1, %s16
    $region7: #{tpu_custom_call.1} parent=1 // loop_footer_branch
      %15 = sbr.rel target = $region3
    $region8: #{tpu_custom_call.1} parent=1 // loop_exit
      _
    %709 = vsyncpa [#allocation3], 1
    %s710 = scalar_lea.sflag [#allocation3], 1
    %711 = vsyncpa %s710, 1

</llo_original>
